<compile_context>
chip_gen: v7x
topology: tpu7x:2x2x1
jax: 0.10.0
libtpu: 0.0.40
codegen_flags: <defaults>
</compile_context>

<pallas_src>
import functools

import jax
import jax.numpy as jnp
from jax import lax
from jax.experimental import pallas as pl
from jax.experimental.pallas import tpu as pltpu

N_COMP = 20        # number of predefined comp concepts
N_QUERY = 8        # refined concepts per patient row
EMB_D = 200        # BioWordVec embedding dim
N_SZ = 10          # first 10 comp concepts are the "seizure" group
THRESH = 0.8
BATCH = 4          # patients in the demo
N_COMP_PAD = 128   # comp rows zero-padded -> lane-dense labels / corr output
MAX_PATIENTS_PER_BLOCK = 512  # ~4 MB query block (x2 buffers) fits v7x scoped VMEM


def _label_kernel(comp_ref, query_ref, label_ref, sz_ref, nsz_ref,
                  *, emb_d, n_query, n_comp, n_sz):
    """One grid step processes a whole block of BB patients.

    comp_ref : (N_COMP_PAD, D_PAD) f32, zero-padded, resident across steps.
    query_ref: (BB * N_QUERY, D_PAD) f32, zero-padded, flattened patient block.
    label_ref: (BB, N_COMP_PAD) int32, lane-dense (valid lanes [0, n_comp)).
    sz_ref / nsz_ref: (BB, D_PAD) f32 group sums of normalized comp rows.
    """
    comp = comp_ref[...]
    q = query_ref[...]
    bb_q, d_pad = q.shape
    n_comp_pad = comp.shape[0]
    bb = bb_q // n_query

    # Valid-lane mask for the zero-padded embedding dim (padding must stay 0
    # after centering so dots / sums over 256 lanes equal the d=200 results).
    lane_d = lax.broadcasted_iota(jnp.int32, (1, d_pad), 1)
    valid_d = lane_d < emb_d

    # --- step 1: L2-normalize comp rows (padded rows/lanes stay exactly 0).
    # Recomputed per grid step: with a coarse patient block this is a handful
    # of VPU passes over a 128x256 tile (negligible vs the query work) and it
    # avoids the megacore hazard of caching under pl.when(program_id == 0).
    comp_ss = jnp.sum(comp * comp, axis=-1, keepdims=True)
    comp_n = comp * lax.rsqrt(jnp.maximum(comp_ss, 1e-30))      # (128, D_PAD)

    # --- step 2: Pearson prep.  Center over the 200 valid lanes only and fold
    # the per-row 1/std into the operands so the dot *is* the correlation.
    # Query L2-normalize is skipped (Pearson is per-row scale invariant).
    inv_d = jnp.float32(1.0 / emb_d)
    comp_mu = jnp.sum(comp_n, axis=-1, keepdims=True) * inv_d
    comp_c = jnp.where(valid_d, comp_n - comp_mu, 0.0)
    comp_c = comp_c * lax.rsqrt(
        jnp.maximum(jnp.sum(comp_c * comp_c, axis=-1, keepdims=True), 1e-30))

    q_mu = jnp.sum(q, axis=-1, keepdims=True) * inv_d
    q_c = jnp.where(valid_d, q - q_mu, 0.0)
    q_c = q_c * lax.rsqrt(
        jnp.maximum(jnp.sum(q_c * q_c, axis=-1, keepdims=True), 1e-30))

    # One fat MXU matmul for the whole patient block: (BB*8, 256) x (256, 128).
    corr = lax.dot_general(
        q_c, comp_c,
        dimension_numbers=(((1,), (1,)), ((), ())),
        preferred_element_type=jnp.float32,
    )                                                           # (BB*8, 128)

    # --- step 3: concept_label = any(corr > 0.8) over each patient's queries.
    hit_f = (corr > THRESH).astype(jnp.float32)
    counts = jnp.sum(hit_f.reshape(bb, n_query, n_comp_pad), axis=1)  # (BB,128)
    labels_f = (counts > 0.5).astype(jnp.float32)
    label_ref[...] = labels_f.astype(jnp.int32)                 # lane-dense store

    # --- step 4: group sums of the normalized comp embeddings on the MXU:
    # label-gated lane masks (BB, 128) x comp_n (128, 256) -> (BB, 256).
    lane_c = lax.broadcasted_iota(jnp.int32, (bb, n_comp_pad), 1)
    mask_sz = jnp.where(lane_c < n_sz, labels_f, 0.0)
    mask_nsz = jnp.where((lane_c >= n_sz) & (lane_c < n_comp), labels_f, 0.0)
    sz_ref[...] = lax.dot_general(
        mask_sz, comp_n, dimension_numbers=(((1,), (0,)), ((), ())),
        preferred_element_type=jnp.float32)
    nsz_ref[...] = lax.dot_general(
        mask_nsz, comp_n, dimension_numbers=(((1,), (0,)), ((), ())),
        preferred_element_type=jnp.float32)


def label_generation_forward(compconcept_emb, concept_emb_batch,
                             *, patients_per_block=MAX_PATIENTS_PER_BLOCK):
    """compconcept_emb: (N_COMP, D) f32; concept_emb_batch: (B, N_QUERY, D) f32.

    Returns (concept_label int32 (B, N_COMP), group_sums f32 (B, 2, D))."""
    n, d = compconcept_emb.shape
    b, k, _ = concept_emb_batch.shape
    d_pad = ((d + 127) // 128) * 128            # 200 -> 256: lane-dense blocks
    n_pad = N_COMP_PAD                          # 20 -> 128: lane-dense labels

    # Zero-padded comp (padded rows: zero correlation, zero group-sum weight).
    comp_p = jnp.zeros((n_pad, d_pad), jnp.float32).at[:n, :d].set(compconcept_emb)

    # Coarse batch tiling: BB patients per grid step (grid collapses to (1,)
    # for small batches).  Pad the batch so every block is full; padded
    # all-zero patients produce no labels and are sliced away below.
    bb = min(b, patients_per_block)
    b_pad = ((b + bb - 1) // bb) * bb
    q = jnp.zeros((b_pad, k, d_pad), jnp.float32).at[:b, :, :d].set(concept_emb_batch)
    q_flat = q.reshape(b_pad * k, d_pad)
    # Queries kept f32 in HBM: bf16 storage would halve DMA bytes but can flip
    # labels for correlations near the 0.8 threshold.

    labels, sz, nsz = pl.pallas_call(
        functools.partial(_label_kernel, emb_d=d, n_query=k, n_comp=n, n_sz=N_SZ),
        out_shape=(
            jax.ShapeDtypeStruct((b_pad, n_pad), jnp.int32),
            jax.ShapeDtypeStruct((b_pad, d_pad), jnp.float32),
            jax.ShapeDtypeStruct((b_pad, d_pad), jnp.float32),
        ),
        grid_spec=pltpu.PrefetchScalarGridSpec(
            num_scalar_prefetch=0,
            grid=(b_pad // bb,),
            in_specs=[
                # comp block identical for every grid step -> stays resident
                pl.BlockSpec((n_pad, d_pad), lambda i: (0, 0)),
                pl.BlockSpec((bb * k, d_pad), lambda i: (i, 0)),
            ],
            out_specs=(
                pl.BlockSpec((bb, n_pad), lambda i: (i, 0)),   # lane-dense labels
                pl.BlockSpec((bb, d_pad), lambda i: (i, 0)),   # sz group sum
                pl.BlockSpec((bb, d_pad), lambda i: (i, 0)),   # nsz group sum
            ),
        ),
        compiler_params=pltpu.CompilerParams(
            dimension_semantics=("parallel",)),
    )(comp_p, q_flat)

    labels = labels[:b, :n]
    sums = jnp.stack([sz[:b, :d], nsz[:b, :d]], axis=1)        # (B, 2, D)
    return labels, sums


def _reference_single(comp, query):
    """Pure-JAX reference mirroring the numpy code in the module (one patient)."""
    comp_n = comp / jnp.linalg.norm(comp, axis=1, keepdims=True)
    query_n = query / jnp.linalg.norm(query, axis=1, keepdims=True)
    full = jnp.corrcoef(jnp.concatenate([comp_n, query_n], axis=0))
    dot = full[: comp.shape[0], comp.shape[0]:]
    label = (dot > THRESH).sum(1) >= 1
    sz = (comp_n[:N_SZ] * label[:N_SZ, None]).sum(0)
    nsz = (comp_n[N_SZ:] * label[N_SZ:, None]).sum(0)
    return label.astype(jnp.int32), jnp.stack([sz, nsz], axis=0)


if __name__ == "__main__":
    key = jax.random.PRNGKey(0)
    k1, k2 = jax.random.split(key)
    # TODO(synk): fasttext BioWordVec lookup + regex phrase refinement has no
    # Pallas equivalent; synthetic deterministic embeddings stand in for it.
    compconcept_emb = jax.random.normal(k1, (N_COMP, EMB_D), dtype=jnp.float32)
    concept_emb = jax.random.normal(k2, (BATCH, N_QUERY, EMB_D), dtype=jnp.float32)
    # Make a few query concepts near-duplicates of comp concepts so that some
    # correlations actually exceed the 0.8 threshold (patient 2 gets none).
    concept_emb = concept_emb.at[0, 0].set(
        compconcept_emb[2] + 0.05 * concept_emb[0, 0])
    concept_emb = concept_emb.at[1, 3].set(
        compconcept_emb[15] + 0.05 * concept_emb[1, 3])
    concept_emb = concept_emb.at[3, 5].set(
        compconcept_emb[7] + 0.05 * concept_emb[3, 5])

    labels, sums = label_generation_forward(compconcept_emb, concept_emb)
    jax.block_until_ready((labels, sums))

    ref_labels, ref_sums = [], []
    for p in range(BATCH):
        l, s = _reference_single(compconcept_emb, concept_emb[p])
        ref_labels.append(l)
        ref_sums.append(s)
    ref_labels = jnp.stack(ref_labels)
    ref_sums = jnp.stack(ref_sums)

    assert bool(jnp.all(labels == ref_labels)), "concept_label mismatch"
    assert bool(jnp.allclose(sums, ref_sums, atol=1e-5)), "group-sum mismatch"

    print("KERNEL_OK")
</pallas_src>

<mosaic_0001>
module attributes {stable_mosaic.version = 11 : i64} {
  func.func @_label_kernel(%arg0: i32, %arg1: memref<128x256xf32, #tpu.memory_space<vmem>>, %arg2: memref<32x256xf32, #tpu.memory_space<vmem>>, %arg3: memref<4x128xi32, #tpu.memory_space<vmem>>, %arg4: memref<4x256xf32, #tpu.memory_space<vmem>>, %arg5: memref<4x256xf32, #tpu.memory_space<vmem>>) attributes {dimension_semantics = [#tpu.dimension_semantics<parallel>], iteration_bounds = array<i64: 1>, scalar_prefetch = 0 : i64, scratch_operands = 0 : i64, tpu.core_type = #tpu.core_type<tc>, window_params = [{pipeline_mode = #tpu.pipeline_mode<synchronous>, transform_indices = @transform_0, window_bounds = array<i64: 128, 256>}, {transform_indices = @transform_1, window_bounds = array<i64: 32, 256>}, {transform_indices = @transform_2, window_bounds = array<i64: 4, 128>}, {transform_indices = @transform_3, window_bounds = array<i64: 4, 256>}, {transform_indices = @transform_4, window_bounds = array<i64: 4, 256>}]} {
    %c0 = arith.constant 0 : index
    %c0_0 = arith.constant 0 : index
    %0 = vector.load %arg1[%c0, %c0_0] : memref<128x256xf32, #tpu.memory_space<vmem>>, vector<128x256xf32>
    %c0_1 = arith.constant 0 : index
    %c0_2 = arith.constant 0 : index
    %1 = vector.load %arg2[%c0_1, %c0_2] : memref<32x256xf32, #tpu.memory_space<vmem>>, vector<32x256xf32>
    %2 = tpu.iota {dimensions = array<i32: 1>} : vector<1x256xi32>
    %c200_i32 = arith.constant 200 : i32
    %3 = vector.broadcast %c200_i32 : i32 to vector<1x256xi32>
    %4 = arith.cmpi slt, %2, %3 : vector<1x256xi32>
    %5 = arith.mulf %0, %0 : vector<128x256xf32>
    %cst = arith.constant dense<0.000000e+00> : vector<128xf32>
    %6 = vector.multi_reduction <add>, %5, %cst [1] : vector<128x256xf32> to vector<128xf32>
    %7 = vector.shape_cast %6 : vector<128xf32> to vector<128x1xf32>
    %cst_3 = arith.constant 1.000000e-30 : f32
    %8 = vector.broadcast %cst_3 : f32 to vector<128x1xf32>
    %9 = arith.maximumf %7, %8 : vector<128x1xf32>
    %10 = math.rsqrt %9 : vector<128x1xf32>
    %11 = vector.broadcast %10 : vector<128x1xf32> to vector<128x256xf32>
    %12 = arith.mulf %0, %11 : vector<128x256xf32>
    %cst_4 = arith.constant dense<0.000000e+00> : vector<128xf32>
    %13 = vector.multi_reduction <add>, %12, %cst_4 [1] : vector<128x256xf32> to vector<128xf32>
    %14 = vector.shape_cast %13 : vector<128xf32> to vector<128x1xf32>
    %cst_5 = arith.constant 5.000000e-03 : f32
    %15 = vector.broadcast %cst_5 : f32 to vector<128x1xf32>
    %16 = arith.mulf %14, %15 : vector<128x1xf32>
    %17 = vector.broadcast %16 : vector<128x1xf32> to vector<128x256xf32>
    %18 = arith.subf %12, %17 : vector<128x256xf32>
    %cst_6 = arith.constant 0.000000e+00 : f32
    %19 = vector.shape_cast %4 : vector<1x256xi1> to vector<1x256xi1>
    %20 = vector.broadcast %19 : vector<1x256xi1> to vector<128x256xi1>
    %21 = vector.broadcast %cst_6 : f32 to vector<128x256xf32>
    %22 = arith.select %20, %18, %21 : vector<128x256xi1>, vector<128x256xf32>
    %23 = arith.mulf %22, %22 : vector<128x256xf32>
    %cst_7 = arith.constant dense<0.000000e+00> : vector<128xf32>
    %24 = vector.multi_reduction <add>, %23, %cst_7 [1] : vector<128x256xf32> to vector<128xf32>
    %25 = vector.shape_cast %24 : vector<128xf32> to vector<128x1xf32>
    %cst_8 = arith.constant 1.000000e-30 : f32
    %26 = vector.broadcast %cst_8 : f32 to vector<128x1xf32>
    %27 = arith.maximumf %25, %26 : vector<128x1xf32>
    %28 = math.rsqrt %27 : vector<128x1xf32>
    %29 = vector.broadcast %28 : vector<128x1xf32> to vector<128x256xf32>
    %30 = arith.mulf %22, %29 : vector<128x256xf32>
    %cst_9 = arith.constant dense<0.000000e+00> : vector<32xf32>
    %31 = vector.multi_reduction <add>, %1, %cst_9 [1] : vector<32x256xf32> to vector<32xf32>
    %32 = vector.shape_cast %31 : vector<32xf32> to vector<32x1xf32>
    %cst_10 = arith.constant 5.000000e-03 : f32
    %33 = vector.broadcast %cst_10 : f32 to vector<32x1xf32>
    %34 = arith.mulf %32, %33 : vector<32x1xf32>
    %35 = vector.broadcast %34 : vector<32x1xf32> to vector<32x256xf32>
    %36 = arith.subf %1, %35 : vector<32x256xf32>
    %cst_11 = arith.constant 0.000000e+00 : f32
    %37 = vector.shape_cast %4 : vector<1x256xi1> to vector<1x256xi1>
    %38 = vector.broadcast %37 : vector<1x256xi1> to vector<32x256xi1>
    %39 = vector.broadcast %cst_11 : f32 to vector<32x256xf32>
    %40 = arith.select %38, %36, %39 : vector<32x256xi1>, vector<32x256xf32>
    %41 = arith.mulf %40, %40 : vector<32x256xf32>
    %cst_12 = arith.constant dense<0.000000e+00> : vector<32xf32>
    %42 = vector.multi_reduction <add>, %41, %cst_12 [1] : vector<32x256xf32> to vector<32xf32>
    %43 = vector.shape_cast %42 : vector<32xf32> to vector<32x1xf32>
    %cst_13 = arith.constant 1.000000e-30 : f32
    %44 = vector.broadcast %cst_13 : f32 to vector<32x1xf32>
    %45 = arith.maximumf %43, %44 : vector<32x1xf32>
    %46 = math.rsqrt %45 : vector<32x1xf32>
    %47 = vector.broadcast %46 : vector<32x1xf32> to vector<32x256xf32>
    %48 = arith.mulf %40, %47 : vector<32x256xf32>
    %cst_14 = arith.constant dense<0.000000e+00> : vector<32x128xf32>
    %49 = tpu.matmul %48, %30, %cst_14 {dimension_numbers = #tpu.dot_dimension_numbers<[1], [1], [0], [0], [0, 0, 1, 0], [], []>} : vector<32x256xf32>, vector<128x256xf32>, vector<32x128xf32> -> vector<32x128xf32>
    %cst_15 = arith.constant 8.000000e-01 : f32
    %50 = vector.broadcast %cst_15 : f32 to vector<32x128xf32>
    %51 = arith.cmpf ogt, %49, %50 : vector<32x128xf32>
    %52 = arith.extui %51 : vector<32x128xi1> to vector<32x128xi32>
    %53 = arith.sitofp %52 : vector<32x128xi32> to vector<32x128xf32>
    %54 = vector.shape_cast %53 : vector<32x128xf32> to vector<4x8x128xf32>
    %cst_16 = arith.constant dense<0.000000e+00> : vector<4x128xf32>
    %55 = vector.multi_reduction <add>, %54, %cst_16 [1] : vector<4x8x128xf32> to vector<4x128xf32>
    %cst_17 = arith.constant 5.000000e-01 : f32
    %56 = vector.broadcast %cst_17 : f32 to vector<4x128xf32>
    %57 = arith.cmpf ogt, %55, %56 : vector<4x128xf32>
    %58 = arith.extui %57 : vector<4x128xi1> to vector<4x128xi32>
    %59 = arith.sitofp %58 : vector<4x128xi32> to vector<4x128xf32>
    %60 = arith.fptosi %59 : vector<4x128xf32> to vector<4x128xi32>
    %c0_18 = arith.constant 0 : index
    %c0_19 = arith.constant 0 : index
    %61 = vector.load %arg3[%c0_18, %c0_19] : memref<4x128xi32, #tpu.memory_space<vmem>>, vector<4x128xi32>
    tpu.vector_store %arg3[%c0_18, %c0_19], %60 {strides = array<i32>} : memref<4x128xi32, #tpu.memory_space<vmem>>, vector<4x128xi32>,
    %62 = tpu.iota {dimensions = array<i32: 1>} : vector<4x128xi32>
    %c10_i32 = arith.constant 10 : i32
    %63 = vector.broadcast %c10_i32 : i32 to vector<4x128xi32>
    %64 = arith.cmpi slt, %62, %63 : vector<4x128xi32>
    %cst_20 = arith.constant 0.000000e+00 : f32
    %65 = vector.broadcast %cst_20 : f32 to vector<4x128xf32>
    %66 = arith.select %64, %59, %65 : vector<4x128xi1>, vector<4x128xf32>
    %c10_i32_21 = arith.constant 10 : i32
    %67 = vector.broadcast %c10_i32_21 : i32 to vector<4x128xi32>
    %68 = arith.cmpi sge, %62, %67 : vector<4x128xi32>
    %c20_i32 = arith.constant 20 : i32
    %69 = vector.broadcast %c20_i32 : i32 to vector<4x128xi32>
    %70 = arith.cmpi slt, %62, %69 : vector<4x128xi32>
    %71 = arith.andi %68, %70 : vector<4x128xi1>
    %cst_22 = arith.constant 0.000000e+00 : f32
    %72 = vector.broadcast %cst_22 : f32 to vector<4x128xf32>
    %73 = arith.select %71, %59, %72 : vector<4x128xi1>, vector<4x128xf32>
    %cst_23 = arith.constant dense<0.000000e+00> : vector<4x256xf32>
    %74 = tpu.matmul %66, %12, %cst_23 {dimension_numbers = #tpu.dot_dimension_numbers<[1], [0], [0], [1], [0, 0, 1, 1], [], []>} : vector<4x128xf32>, vector<128x256xf32>, vector<4x256xf32> -> vector<4x256xf32>
    %c0_24 = arith.constant 0 : index
    %c0_25 = arith.constant 0 : index
    %75 = vector.load %arg4[%c0_24, %c0_25] : memref<4x256xf32, #tpu.memory_space<vmem>>, vector<4x256xf32>
    tpu.vector_store %arg4[%c0_24, %c0_25], %74 {strides = array<i32>} : memref<4x256xf32, #tpu.memory_space<vmem>>, vector<4x256xf32>,
    %cst_26 = arith.constant dense<0.000000e+00> : vector<4x256xf32>
    %76 = tpu.matmul %73, %12, %cst_26 {dimension_numbers = #tpu.dot_dimension_numbers<[1], [0], [0], [1], [0, 0, 1, 1], [], []>} : vector<4x128xf32>, vector<128x256xf32>, vector<4x256xf32> -> vector<4x256xf32>
    %c0_27 = arith.constant 0 : index
    %c0_28 = arith.constant 0 : index
    %77 = vector.load %arg5[%c0_27, %c0_28] : memref<4x256xf32, #tpu.memory_space<vmem>>, vector<4x256xf32>
    tpu.vector_store %arg5[%c0_27, %c0_28], %76 {strides = array<i32>} : memref<4x256xf32, #tpu.memory_space<vmem>>, vector<4x256xf32>,
    return
  }
  func.func @transform_0(%arg0: i32) -> (i32, i32) {
    %c0_i32 = arith.constant 0 : i32
    %c0_i32_0 = arith.constant 0 : i32
    %c0_i32_1 = arith.constant 0 : i32
    return %c0_i32, %c0_i32_0 : i32, i32
  }
  func.func @transform_1(%arg0: i32) -> (i32, i32) {
    %c0_i32 = arith.constant 0 : i32
    %c0_i32_0 = arith.constant 0 : i32
    return %arg0, %c0_i32 : i32, i32
  }
  func.func @transform_2(%arg0: i32) -> (i32, i32) {
    %c0_i32 = arith.constant 0 : i32
    %c0_i32_0 = arith.constant 0 : i32
    return %arg0, %c0_i32 : i32, i32
  }
  func.func @transform_3(%arg0: i32) -> (i32, i32) {
    %c0_i32 = arith.constant 0 : i32
    %c0_i32_0 = arith.constant 0 : i32
    return %arg0, %c0_i32 : i32, i32
  }
  func.func @transform_4(%arg0: i32) -> (i32, i32) {
    %c0_i32 = arith.constant 0 : i32
    %c0_i32_0 = arith.constant 0 : i32
    return %arg0, %c0_i32 : i32, i32
  }
}

</mosaic_0001>

<llo_original>
// kernel: tpu_custom_call.1
$region0: #{tpu_custom_call.1}
  #allocation0 [shape = 'u32[]', space=smem, size = 0x4, offset = 0x4, fixed_abs, tag = 'smem constant byte address 0x4 - core index']
  #allocation1 [shape = 'u32[144,128]{1,0:T(1,128)}', space=vmem, size = 0x12000, scoped, tag = 'internal scratch']
  %s0 = inlined_call_operand.hbm [shape: f32[128,256], index: 0, kind: input, shape index: {}]
  %s1 = inlined_call_operand.hbm [shape: f32[32,256], index: 1, kind: input, shape index: {}]
  %s2 = inlined_call_operand.hbm [shape: s32[4,128], index: 2, kind: output, shape index: {0}]
  %s3 = inlined_call_operand.hbm [shape: f32[4,256], index: 3, kind: output, shape index: {1}]
  %s4 = inlined_call_operand.hbm [shape: f32[4,256], index: 4, kind: output, shape index: {2}]
  %5 = xla_tuple %s2, %s3, %s4
  %s6 = sld [smem:[#allocation0]]
  $region42: #{tpu_custom_call.1} parent=0
    _
  %s8 = ssub.s32 1, %s6
  %s9 = scalar_select 0, %s8, %s6
  $region1: #{tpu_custom_call.1} parent=0
    #allocation2 [shape = 'u8[131072]{0}', space=vmem, size = 0x20000, scoped, tag = 'input window, operand 0, single buffered']
    #allocation3 [shape = 's32[1]{0}', space=sflag, size = 0x4, scoped, tag = 'scoped memory for tpu_custom_call.1']
    #allocation4 [shape = 's32[1]{0}', space=sflag, size = 0x4, scoped, tag = 'scoped memory for tpu_custom_call.1']
    #allocation5 [shape = 'u8[32768]{0}', space=vmem, size = 0x8000, scoped, tag = 'input window, operand 1, single buffered']
    #allocation6 [shape = 's32[1]{0}', space=sflag, size = 0x4, scoped, tag = 'scoped memory for tpu_custom_call.1']
    #allocation7 [shape = 'u8[2048]{0}', space=vmem, size = 0x800, scoped, tag = 'output window, operand 0, single buffered']
    #allocation8 [shape = 'u8[4096]{0}', space=vmem, size = 0x1000, scoped, tag = 'output window, operand 1, single buffered']
    #allocation9 [shape = 's32[1]{0}', space=sflag, size = 0x4, scoped, tag = 'scoped memory for tpu_custom_call.1']
    #allocation10 [shape = 'u8[4096]{0}', space=vmem, size = 0x1000, scoped, tag = 'output window, operand 2, single buffered']
    %10 = vsyncpa [#allocation3], 0
    %11 = vsyncpa [#allocation6], 0
    %12 = vsyncpa [#allocation4], 0
    %13 = vsyncpa [#allocation9], 0
    // Predicated region
    $region2: #{tpu_custom_call.1} parent=1 // pred_check
      _
    $region3: #{tpu_custom_call.1} parent=1 // pred_check_branch
      %15 = sbr.rel (0) target = $region5
    $region4: #{tpu_custom_call.1} parent=1 // pred_region
      %s17 = ssub.s32 4096, 4096
      %18 = vsyncadd [#allocation3], %s17
      %s19 = sshll.u32 [#allocation2], 4
      %s20 = int_to_ptr.vmem [resolvable:$true] %s19
      %25 = dma.hbm_to_vmem [thread:$0]  %s0, 4096, %s20, [#allocation3], 256, 256, 16
    $region5: #{tpu_custom_call.1} parent=1 // pred_fallthru
      _
    // Predicated region
    $region6: #{tpu_custom_call.1} parent=1 // pred_check
      _
    $region7: #{tpu_custom_call.1} parent=1 // pred_check_branch
      %27 = sbr.rel (0) target = $region9
    $region8: #{tpu_custom_call.1} parent=1 // pred_region
      %s29 = ssub.s32 1024, 1024
      %30 = vsyncadd [#allocation6], %s29
      %s31 = sshll.u32 [#allocation5], 4
      %s32 = int_to_ptr.vmem [resolvable:$true] %s31
      %37 = dma.hbm_to_vmem [thread:$0]  %s1, 1024, %s32, [#allocation6], 256, 256, 16
    $region9: #{tpu_custom_call.1} parent=1 // pred_fallthru
      _
    // Predicated region
    $region10: #{tpu_custom_call.1} parent=1 // pred_check
      _
    $region11: #{tpu_custom_call.1} parent=1 // pred_check_branch
      %39 = sbr.rel (0) target = $region13
    $region12: #{tpu_custom_call.1} parent=1 // pred_region
      %40 = dma.done [#allocation3], 4096
    $region13: #{tpu_custom_call.1} parent=1 // pred_fallthru
      _
    // Predicated region
    $region14: #{tpu_custom_call.1} parent=1 // pred_check
      _
    $region15: #{tpu_custom_call.1} parent=1 // pred_check_branch
      %42 = sbr.rel (0) target = $region17
    $region16: #{tpu_custom_call.1} parent=1 // pred_region
      %43 = dma.done [#allocation6], 1024
    $region17: #{tpu_custom_call.1} parent=1 // pred_fallthru
      _
    %v44 = vld [vmem:[#allocation2] sm:$0xff]
    %v45 = vld [vmem:[#allocation2 + $0x8] sm:$0xff]
    %v46 = vld [vmem:[#allocation2 + $0x10] sm:$0xff]
    %v47 = vld [vmem:[#allocation2 + $0x18] sm:$0xff]
    %v48 = vld [vmem:[#allocation2 + $0x20] sm:$0xff]
    %v49 = vld [vmem:[#allocation2 + $0x28] sm:$0xff]
    %v50 = vld [vmem:[#allocation2 + $0x30] sm:$0xff]
    %v51 = vld [vmem:[#allocation2 + $0x38] sm:$0xff]
    %v52 = vld [vmem:[#allocation2 + $0x40] sm:$0xff]
    %v53 = vld [vmem:[#allocation2 + $0x48] sm:$0xff]
    %v54 = vld [vmem:[#allocation2 + $0x50] sm:$0xff]
    %v55 = vld [vmem:[#allocation2 + $0x58] sm:$0xff]
    %v56 = vld [vmem:[#allocation2 + $0x60] sm:$0xff]
    %v57 = vld [vmem:[#allocation2 + $0x68] sm:$0xff]
    %v58 = vld [vmem:[#allocation2 + $0x70] sm:$0xff]
    %v59 = vld [vmem:[#allocation2 + $0x78] sm:$0xff]
    %v60 = vld [vmem:[#allocation2 + $0x80] sm:$0xff]
    %v61 = vld [vmem:[#allocation2 + $0x88] sm:$0xff]
    %v62 = vld [vmem:[#allocation2 + $0x90] sm:$0xff]
    %v63 = vld [vmem:[#allocation2 + $0x98] sm:$0xff]
    %v64 = vld [vmem:[#allocation2 + $0xa0] sm:$0xff]
    %v65 = vld [vmem:[#allocation2 + $0xa8] sm:$0xff]
    %v66 = vld [vmem:[#allocation2 + $0xb0] sm:$0xff]
    %v67 = vld [vmem:[#allocation2 + $0xb8] sm:$0xff]
    %v68 = vld [vmem:[#allocation2 + $0xc0] sm:$0xff]
    %v69 = vld [vmem:[#allocation2 + $0xc8] sm:$0xff]
    %v70 = vld [vmem:[#allocation2 + $0xd0] sm:$0xff]
    %v71 = vld [vmem:[#allocation2 + $0xd8] sm:$0xff]
    %v72 = vld [vmem:[#allocation2 + $0xe0] sm:$0xff]
    %v73 = vld [vmem:[#allocation2 + $0xe8] sm:$0xff]
    %v74 = vld [vmem:[#allocation2 + $0xf0] sm:$0xff]
    %v75 = vld [vmem:[#allocation2 + $0xf8] sm:$0xff]
    %v76 = vld [vmem:[#allocation5] sm:$0xff]
    %v77 = vld [vmem:[#allocation5 + $0x8] sm:$0xff]
    %v78 = vld [vmem:[#allocation5 + $0x10] sm:$0xff]
    %v79 = vld [vmem:[#allocation5 + $0x18] sm:$0xff]
    %v80 = vld [vmem:[#allocation5 + $0x20] sm:$0xff]
    %v81 = vld [vmem:[#allocation5 + $0x28] sm:$0xff]
    %v82 = vld [vmem:[#allocation5 + $0x30] sm:$0xff]
    %v83 = vld [vmem:[#allocation5 + $0x38] sm:$0xff]
    %v84 = vlaneseq
    %v85 = vand.u32 %v84, 127
    %v86 = vadd.s32 %v85, 128
    %vm87 = vcmp.lt.s32.totalorder %v85, 200
    %vm88 = vcmp.lt.s32.totalorder %v86, 200
    %v89 = vmul.f32 %v44, %v44
    %v90 = vmul.f32 %v45, %v45
    %v91 = vmul.f32 %v46, %v46
    %v92 = vmul.f32 %v47, %v47
    %v93 = vmul.f32 %v48, %v48
    %v94 = vmul.f32 %v49, %v49
    %v95 = vmul.f32 %v50, %v50
    %v96 = vmul.f32 %v51, %v51
    %v97 = vmul.f32 %v52, %v52
    %v98 = vmul.f32 %v53, %v53
    %v99 = vmul.f32 %v54, %v54
    %v100 = vmul.f32 %v55, %v55
    %v101 = vmul.f32 %v56, %v56
    %v102 = vmul.f32 %v57, %v57
    %v103 = vmul.f32 %v58, %v58
    %v104 = vmul.f32 %v59, %v59
    %v105 = vmul.f32 %v60, %v60
    %v106 = vmul.f32 %v61, %v61
    %v107 = vmul.f32 %v62, %v62
    %v108 = vmul.f32 %v63, %v63
    %v109 = vmul.f32 %v64, %v64
    %v110 = vmul.f32 %v65, %v65
    %v111 = vmul.f32 %v66, %v66
    %v112 = vmul.f32 %v67, %v67
    %v113 = vmul.f32 %v68, %v68
    %v114 = vmul.f32 %v69, %v69
    %v115 = vmul.f32 %v70, %v70
    %v116 = vmul.f32 %v71, %v71
    %v117 = vmul.f32 %v72, %v72
    %v118 = vmul.f32 %v73, %v73
    %v119 = vmul.f32 %v74, %v74
    %v120 = vmul.f32 %v75, %v75
    %v121 = vadd.f32 %v89, %v90
    %122 = vadd.xlane.f32.xlu0 %v121
    %v123 = vpop.xlane.xlu0 %122
    %v124 = vadd.f32 %v91, %v92
    %125 = vadd.xlane.f32.xlu0 %v124
    %v126 = vpop.xlane.xlu0 %125
    %v127 = vadd.f32 %v93, %v94
    %128 = vadd.xlane.f32.xlu0 %v127
    %v129 = vpop.xlane.xlu0 %128
    %v130 = vadd.f32 %v95, %v96
    %131 = vadd.xlane.f32.xlu0 %v130
    %v132 = vpop.xlane.xlu0 %131
    %v133 = vadd.f32 %v97, %v98
    %134 = vadd.xlane.f32.xlu0 %v133
    %v135 = vpop.xlane.xlu0 %134
    %v136 = vadd.f32 %v99, %v100
    %137 = vadd.xlane.f32.xlu0 %v136
    %v138 = vpop.xlane.xlu0 %137
    %v139 = vadd.f32 %v101, %v102
    %140 = vadd.xlane.f32.xlu0 %v139
    %v141 = vpop.xlane.xlu0 %140
    %v142 = vadd.f32 %v103, %v104
    %143 = vadd.xlane.f32.xlu0 %v142
    %v144 = vpop.xlane.xlu0 %143
    %v145 = vadd.f32 %v105, %v106
    %146 = vadd.xlane.f32.xlu0 %v145
    %v147 = vpop.xlane.xlu0 %146
    %v148 = vadd.f32 %v107, %v108
    %149 = vadd.xlane.f32.xlu0 %v148
    %v150 = vpop.xlane.xlu0 %149
    %v151 = vadd.f32 %v109, %v110
    %152 = vadd.xlane.f32.xlu0 %v151
    %v153 = vpop.xlane.xlu0 %152
    %v154 = vadd.f32 %v111, %v112
    %155 = vadd.xlane.f32.xlu0 %v154
    %v156 = vpop.xlane.xlu0 %155
    %v157 = vadd.f32 %v113, %v114
    %158 = vadd.xlane.f32.xlu0 %v157
    %v159 = vpop.xlane.xlu0 %158
    %v160 = vadd.f32 %v115, %v116
    %161 = vadd.xlane.f32.xlu0 %v160
    %v162 = vpop.xlane.xlu0 %161
    %v163 = vadd.f32 %v117, %v118
    %164 = vadd.xlane.f32.xlu0 %v163
    %v165 = vpop.xlane.xlu0 %164
    %v166 = vadd.f32 %v119, %v120
    %167 = vadd.xlane.f32.xlu0 %v166
    %v168 = vpop.xlane.xlu0 %167
    %v169 = vmax.f32 %v123, 1e-30
    %v170 = vmax.f32 %v126, 1e-30
    %v171 = vmax.f32 %v129, 1e-30
    %v172 = vmax.f32 %v132, 1e-30
    %v173 = vmax.f32 %v135, 1e-30
    %v174 = vmax.f32 %v138, 1e-30
    %v175 = vmax.f32 %v141, 1e-30
    %v176 = vmax.f32 %v144, 1e-30
    %v177 = vmax.f32 %v147, 1e-30
    %v178 = vmax.f32 %v150, 1e-30
    %v179 = vmax.f32 %v153, 1e-30
    %v180 = vmax.f32 %v156, 1e-30
    %v181 = vmax.f32 %v159, 1e-30
    %v182 = vmax.f32 %v162, 1e-30
    %v183 = vmax.f32 %v165, 1e-30
    %v184 = vmax.f32 %v168, 1e-30
    %v185 = vrsqrt.pop %v169
    %v186 = vrsqrt.pop %v170
    %v187 = vrsqrt.pop %v171
    %v188 = vrsqrt.pop %v172
    %v189 = vrsqrt.pop %v173
    %v190 = vrsqrt.pop %v174
    %v191 = vrsqrt.pop %v175
    %v192 = vrsqrt.pop %v176
    %v193 = vrsqrt.pop %v177
    %v194 = vrsqrt.pop %v178
    %v195 = vrsqrt.pop %v179
    %v196 = vrsqrt.pop %v180
    %v197 = vrsqrt.pop %v181
    %v198 = vrsqrt.pop %v182
    %v199 = vrsqrt.pop %v183
    %v200 = vrsqrt.pop %v184
    %v201 = vmul.f32 %v44, %v185
    %v202 = vmul.f32 %v45, %v185
    %v203 = vmul.f32 %v46, %v186
    %v204 = vmul.f32 %v47, %v186
    %v205 = vmul.f32 %v48, %v187
    %v206 = vmul.f32 %v49, %v187
    %v207 = vmul.f32 %v50, %v188
    %v208 = vmul.f32 %v51, %v188
    %v209 = vmul.f32 %v52, %v189
    %v210 = vmul.f32 %v53, %v189
    %v211 = vmul.f32 %v54, %v190
    %v212 = vmul.f32 %v55, %v190
    %v213 = vmul.f32 %v56, %v191
    %v214 = vmul.f32 %v57, %v191
    %v215 = vmul.f32 %v58, %v192
    %v216 = vmul.f32 %v59, %v192
    %v217 = vmul.f32 %v60, %v193
    %v218 = vmul.f32 %v61, %v193
    %v219 = vmul.f32 %v62, %v194
    %v220 = vmul.f32 %v63, %v194
    %v221 = vmul.f32 %v64, %v195
    %v222 = vmul.f32 %v65, %v195
    %v223 = vmul.f32 %v66, %v196
    %v224 = vmul.f32 %v67, %v196
    %v225 = vmul.f32 %v68, %v197
    %v226 = vmul.f32 %v69, %v197
    %v227 = vmul.f32 %v70, %v198
    %v228 = vmul.f32 %v71, %v198
    %v229 = vmul.f32 %v72, %v199
    %v230 = vmul.f32 %v73, %v199
    %v231 = vmul.f32 %v74, %v200
    %v232 = vmul.f32 %v75, %v200
    %v233 = vadd.f32 %v201, %v202
    %234 = vadd.xlane.f32.xlu0 %v233
    %v235 = vpop.xlane.xlu0 %234
    %v236 = vadd.f32 %v203, %v204
    %237 = vadd.xlane.f32.xlu0 %v236
    %v238 = vpop.xlane.xlu0 %237
    %v239 = vadd.f32 %v205, %v206
    %240 = vadd.xlane.f32.xlu0 %v239
    %v241 = vpop.xlane.xlu0 %240
    %v242 = vadd.f32 %v207, %v208
    %243 = vadd.xlane.f32.xlu0 %v242
    %v244 = vpop.xlane.xlu0 %243
    %v245 = vadd.f32 %v209, %v210
    %246 = vadd.xlane.f32.xlu0 %v245
    %v247 = vpop.xlane.xlu0 %246
    %v248 = vadd.f32 %v211, %v212
    %249 = vadd.xlane.f32.xlu0 %v248
    %v250 = vpop.xlane.xlu0 %249
    %v251 = vadd.f32 %v213, %v214
    %252 = vadd.xlane.f32.xlu0 %v251
    %v253 = vpop.xlane.xlu0 %252
    %v254 = vadd.f32 %v215, %v216
    %255 = vadd.xlane.f32.xlu0 %v254
    %v256 = vpop.xlane.xlu0 %255
    %v257 = vadd.f32 %v217, %v218
    %258 = vadd.xlane.f32.xlu0 %v257
    %v259 = vpop.xlane.xlu0 %258
    %v260 = vadd.f32 %v219, %v220
    %261 = vadd.xlane.f32.xlu0 %v260
    %v262 = vpop.xlane.xlu0 %261
    %v263 = vadd.f32 %v221, %v222
    %264 = vadd.xlane.f32.xlu0 %v263
    %v265 = vpop.xlane.xlu0 %264
    %v266 = vadd.f32 %v223, %v224
    %267 = vadd.xlane.f32.xlu0 %v266
    %v268 = vpop.xlane.xlu0 %267
    %v269 = vadd.f32 %v225, %v226
    %270 = vadd.xlane.f32.xlu0 %v269
    %v271 = vpop.xlane.xlu0 %270
    %v272 = vadd.f32 %v227, %v228
    %273 = vadd.xlane.f32.xlu0 %v272
    %v274 = vpop.xlane.xlu0 %273
    %v275 = vadd.f32 %v229, %v230
    %276 = vadd.xlane.f32.xlu0 %v275
    %v277 = vpop.xlane.xlu0 %276
    %v278 = vadd.f32 %v231, %v232
    %279 = vadd.xlane.f32.xlu0 %v278
    %v280 = vpop.xlane.xlu0 %279
    %v281 = vmul.f32 %v235, 0.005
    %v282 = vmul.f32 %v238, 0.005
    %v283 = vmul.f32 %v241, 0.005
    %v284 = vmul.f32 %v244, 0.005
    %v285 = vmul.f32 %v247, 0.005
    %v286 = vmul.f32 %v250, 0.005
    %v287 = vmul.f32 %v253, 0.005
    %v288 = vmul.f32 %v256, 0.005
    %v289 = vmul.f32 %v259, 0.005
    %v290 = vmul.f32 %v262, 0.005
    %v291 = vmul.f32 %v265, 0.005
    %v292 = vmul.f32 %v268, 0.005
    %v293 = vmul.f32 %v271, 0.005
    %v294 = vmul.f32 %v274, 0.005
    %v295 = vmul.f32 %v277, 0.005
    %v296 = vmul.f32 %v280, 0.005
    %v297 = vsub.f32 %v201, %v281
    %v298 = vsub.f32 %v202, %v281
    %v299 = vsub.f32 %v203, %v282
    %v300 = vsub.f32 %v204, %v282
    %v301 = vsub.f32 %v205, %v283
    %v302 = vsub.f32 %v206, %v283
    %v303 = vsub.f32 %v207, %v284
    %v304 = vsub.f32 %v208, %v284
    %v305 = vsub.f32 %v209, %v285
    %v306 = vsub.f32 %v210, %v285
    %v307 = vsub.f32 %v211, %v286
    %v308 = vsub.f32 %v212, %v286
    %v309 = vsub.f32 %v213, %v287
    %v310 = vsub.f32 %v214, %v287
    %v311 = vsub.f32 %v215, %v288
    %v312 = vsub.f32 %v216, %v288
    %v313 = vsub.f32 %v217, %v289
    %v314 = vsub.f32 %v218, %v289
    %v315 = vsub.f32 %v219, %v290
    %v316 = vsub.f32 %v220, %v290
    %v317 = vsub.f32 %v221, %v291
    %v318 = vsub.f32 %v222, %v291
    %v319 = vsub.f32 %v223, %v292
    %v320 = vsub.f32 %v224, %v292
    %v321 = vsub.f32 %v225, %v293
    %v322 = vsub.f32 %v226, %v293
    %v323 = vsub.f32 %v227, %v294
    %v324 = vsub.f32 %v228, %v294
    %v325 = vsub.f32 %v229, %v295
    %v326 = vsub.f32 %v230, %v295
    %v327 = vsub.f32 %v231, %v296
    %v328 = vsub.f32 %v232, %v296
    %v329 = vsel %vm87, 1, 0
    %v330 = vsel %vm88, 1, 0
    %vm331 = vcmp.eq.s32.totalorder %v329, 1
    %vm332 = vcmp.eq.s32.totalorder %v330, 1
    %v333 = vsel %vm331, %v297, 0.0
    %v334 = vsel %vm332, %v298, 0.0
    %v335 = vsel %vm331, %v299, 0.0
    %v336 = vsel %vm332, %v300, 0.0
    %v337 = vsel %vm331, %v301, 0.0
    %v338 = vsel %vm332, %v302, 0.0
    %v339 = vsel %vm331, %v303, 0.0
    %v340 = vsel %vm332, %v304, 0.0
    %v341 = vsel %vm331, %v305, 0.0
    %v342 = vsel %vm332, %v306, 0.0
    %v343 = vsel %vm331, %v307, 0.0
    %v344 = vsel %vm332, %v308, 0.0
    %v345 = vsel %vm331, %v309, 0.0
    %v346 = vsel %vm332, %v310, 0.0
    %v347 = vsel %vm331, %v311, 0.0
    %v348 = vsel %vm332, %v312, 0.0
    %v349 = vsel %vm331, %v313, 0.0
    %v350 = vsel %vm332, %v314, 0.0
    %v351 = vsel %vm331, %v315, 0.0
    %v352 = vsel %vm332, %v316, 0.0
    %v353 = vsel %vm331, %v317, 0.0
    %v354 = vsel %vm332, %v318, 0.0
    %v355 = vsel %vm331, %v319, 0.0
    %v356 = vsel %vm332, %v320, 0.0
    %v357 = vsel %vm331, %v321, 0.0
    %v358 = vsel %vm332, %v322, 0.0
    %v359 = vsel %vm331, %v323, 0.0
    %v360 = vsel %vm332, %v324, 0.0
    %v361 = vsel %vm331, %v325, 0.0
    %v362 = vsel %vm332, %v326, 0.0
    %v363 = vsel %vm331, %v327, 0.0
    %v364 = vsel %vm332, %v328, 0.0
    %v365 = vmul.f32 %v333, %v333
    %v366 = vmul.f32 %v334, %v334
    %v367 = vmul.f32 %v335, %v335
    %v368 = vmul.f32 %v336, %v336
    %v369 = vmul.f32 %v337, %v337
    %v370 = vmul.f32 %v338, %v338
    %v371 = vmul.f32 %v339, %v339
    %v372 = vmul.f32 %v340, %v340
    %v373 = vmul.f32 %v341, %v341
    %v374 = vmul.f32 %v342, %v342
    %v375 = vmul.f32 %v343, %v343
    %v376 = vmul.f32 %v344, %v344
    %v377 = vmul.f32 %v345, %v345
    %v378 = vmul.f32 %v346, %v346
    %v379 = vmul.f32 %v347, %v347
    %v380 = vmul.f32 %v348, %v348
    %v381 = vmul.f32 %v349, %v349
    %v382 = vmul.f32 %v350, %v350
    %v383 = vmul.f32 %v351, %v351
    %v384 = vmul.f32 %v352, %v352
    %v385 = vmul.f32 %v353, %v353
    %v386 = vmul.f32 %v354, %v354
    %v387 = vmul.f32 %v355, %v355
    %v388 = vmul.f32 %v356, %v356
    %v389 = vmul.f32 %v357, %v357
    %v390 = vmul.f32 %v358, %v358
    %v391 = vmul.f32 %v359, %v359
    %v392 = vmul.f32 %v360, %v360
    %v393 = vmul.f32 %v361, %v361
    %v394 = vmul.f32 %v362, %v362
    %v395 = vmul.f32 %v363, %v363
    %v396 = vmul.f32 %v364, %v364
    %v397 = vadd.f32 %v365, %v366
    %398 = vadd.xlane.f32.xlu0 %v397
    %v399 = vpop.xlane.xlu0 %398
    %v400 = vadd.f32 %v367, %v368
    %401 = vadd.xlane.f32.xlu0 %v400
    %v402 = vpop.xlane.xlu0 %401
    %v403 = vadd.f32 %v369, %v370
    %404 = vadd.xlane.f32.xlu0 %v403
    %v405 = vpop.xlane.xlu0 %404
    %v406 = vadd.f32 %v371, %v372
    %407 = vadd.xlane.f32.xlu0 %v406
    %v408 = vpop.xlane.xlu0 %407
    %v409 = vadd.f32 %v373, %v374
    %410 = vadd.xlane.f32.xlu0 %v409
    %v411 = vpop.xlane.xlu0 %410
    %v412 = vadd.f32 %v375, %v376
    %413 = vadd.xlane.f32.xlu0 %v412
    %v414 = vpop.xlane.xlu0 %413
    %v415 = vadd.f32 %v377, %v378
    %416 = vadd.xlane.f32.xlu0 %v415
    %v417 = vpop.xlane.xlu0 %416
    %v418 = vadd.f32 %v379, %v380
    %419 = vadd.xlane.f32.xlu0 %v418
    %v420 = vpop.xlane.xlu0 %419
    %v421 = vadd.f32 %v381, %v382
    %422 = vadd.xlane.f32.xlu0 %v421
    %v423 = vpop.xlane.xlu0 %422
    %v424 = vadd.f32 %v383, %v384
    %425 = vadd.xlane.f32.xlu0 %v424
    %v426 = vpop.xlane.xlu0 %425
    %v427 = vadd.f32 %v385, %v386
    %428 = vadd.xlane.f32.xlu0 %v427
    %v429 = vpop.xlane.xlu0 %428
    %v430 = vadd.f32 %v387, %v388
    %431 = vadd.xlane.f32.xlu0 %v430
    %v432 = vpop.xlane.xlu0 %431
    %v433 = vadd.f32 %v389, %v390
    %434 = vadd.xlane.f32.xlu0 %v433
    %v435 = vpop.xlane.xlu0 %434
    %v436 = vadd.f32 %v391, %v392
    %437 = vadd.xlane.f32.xlu0 %v436
    %v438 = vpop.xlane.xlu0 %437
    %v439 = vadd.f32 %v393, %v394
    %440 = vadd.xlane.f32.xlu0 %v439
    %v441 = vpop.xlane.xlu0 %440
    %v442 = vadd.f32 %v395, %v396
    %443 = vadd.xlane.f32.xlu0 %v442
    %v444 = vpop.xlane.xlu0 %443
    %v445 = vmax.f32 %v399, 1e-30
    %v446 = vmax.f32 %v402, 1e-30
    %v447 = vmax.f32 %v405, 1e-30
    %v448 = vmax.f32 %v408, 1e-30
    %v449 = vmax.f32 %v411, 1e-30
    %v450 = vmax.f32 %v414, 1e-30
    %v451 = vmax.f32 %v417, 1e-30
    %v452 = vmax.f32 %v420, 1e-30
    %v453 = vmax.f32 %v423, 1e-30
    %v454 = vmax.f32 %v426, 1e-30
    %v455 = vmax.f32 %v429, 1e-30
    %v456 = vmax.f32 %v432, 1e-30
    %v457 = vmax.f32 %v435, 1e-30
    %v458 = vmax.f32 %v438, 1e-30
    %v459 = vmax.f32 %v441, 1e-30
    %v460 = vmax.f32 %v444, 1e-30
    %v461 = vrsqrt.pop %v445
    %v462 = vrsqrt.pop %v446
    %v463 = vrsqrt.pop %v447
    %v464 = vrsqrt.pop %v448
    %v465 = vrsqrt.pop %v449
    %v466 = vrsqrt.pop %v450
    %v467 = vrsqrt.pop %v451
    %v468 = vrsqrt.pop %v452
    %v469 = vrsqrt.pop %v453
    %v470 = vrsqrt.pop %v454
    %v471 = vrsqrt.pop %v455
    %v472 = vrsqrt.pop %v456
    %v473 = vrsqrt.pop %v457
    %v474 = vrsqrt.pop %v458
    %v475 = vrsqrt.pop %v459
    %v476 = vrsqrt.pop %v460
    %v477 = vmul.f32 %v333, %v461
    %v478 = vmul.f32 %v334, %v461
    %v479 = vmul.f32 %v335, %v462
    %v480 = vmul.f32 %v336, %v462
    %v481 = vmul.f32 %v337, %v463
    %v482 = vmul.f32 %v338, %v463
    %v483 = vmul.f32 %v339, %v464
    %v484 = vmul.f32 %v340, %v464
    %v485 = vmul.f32 %v341, %v465
    %v486 = vmul.f32 %v342, %v465
    %v487 = vmul.f32 %v343, %v466
    %v488 = vmul.f32 %v344, %v466
    %v489 = vmul.f32 %v345, %v467
    %v490 = vmul.f32 %v346, %v467
    %v491 = vmul.f32 %v347, %v468
    %v492 = vmul.f32 %v348, %v468
    %v493 = vmul.f32 %v349, %v469
    %v494 = vmul.f32 %v350, %v469
    %v495 = vmul.f32 %v351, %v470
    %v496 = vmul.f32 %v352, %v470
    %v497 = vmul.f32 %v353, %v471
    %v498 = vmul.f32 %v354, %v471
    %v499 = vmul.f32 %v355, %v472
    %v500 = vmul.f32 %v356, %v472
    %v501 = vmul.f32 %v357, %v473
    %v502 = vmul.f32 %v358, %v473
    %v503 = vmul.f32 %v359, %v474
    %v504 = vmul.f32 %v360, %v474
    %v505 = vmul.f32 %v361, %v475
    %v506 = vmul.f32 %v362, %v475
    %v507 = vmul.f32 %v363, %v476
    %v508 = vmul.f32 %v364, %v476
    %v509 = vadd.f32 %v76, %v77
    %510 = vadd.xlane.f32.xlu0 %v509
    %v511 = vpop.xlane.xlu0 %510
    %v512 = vadd.f32 %v78, %v79
    %513 = vadd.xlane.f32.xlu0 %v512
    %v514 = vpop.xlane.xlu0 %513
    %v515 = vadd.f32 %v80, %v81
    %516 = vadd.xlane.f32.xlu0 %v515
    %v517 = vpop.xlane.xlu0 %516
    %v518 = vadd.f32 %v82, %v83
    %519 = vadd.xlane.f32.xlu0 %v518
    %v520 = vpop.xlane.xlu0 %519
    %v521 = vmul.f32 %v511, 0.005
    %v522 = vmul.f32 %v514, 0.005
    %v523 = vmul.f32 %v517, 0.005
    %v524 = vmul.f32 %v520, 0.005
    %v525 = vsub.f32 %v76, %v521
    %v526 = vsub.f32 %v77, %v521
    %v527 = vsub.f32 %v78, %v522
    %v528 = vsub.f32 %v79, %v522
    %v529 = vsub.f32 %v80, %v523
    %v530 = vsub.f32 %v81, %v523
    %v531 = vsub.f32 %v82, %v524
    %v532 = vsub.f32 %v83, %v524
    %v533 = vsel %vm331, %v525, 0.0
    %v534 = vsel %vm332, %v526, 0.0
    %v535 = vsel %vm331, %v527, 0.0
    %v536 = vsel %vm332, %v528, 0.0
    %v537 = vsel %vm331, %v529, 0.0
    %v538 = vsel %vm332, %v530, 0.0
    %v539 = vsel %vm331, %v531, 0.0
    %v540 = vsel %vm332, %v532, 0.0
    %v541 = vmul.f32 %v533, %v533
    %v542 = vmul.f32 %v534, %v534
    %v543 = vmul.f32 %v535, %v535
    %v544 = vmul.f32 %v536, %v536
    %v545 = vmul.f32 %v537, %v537
    %v546 = vmul.f32 %v538, %v538
    %v547 = vmul.f32 %v539, %v539
    %v548 = vmul.f32 %v540, %v540
    %v549 = vadd.f32 %v541, %v542
    %550 = vadd.xlane.f32.xlu0 %v549
    %v551 = vpop.xlane.xlu0 %550
    %v552 = vadd.f32 %v543, %v544
    %553 = vadd.xlane.f32.xlu0 %v552
    %v554 = vpop.xlane.xlu0 %553
    %v555 = vadd.f32 %v545, %v546
    %556 = vadd.xlane.f32.xlu0 %v555
    %v557 = vpop.xlane.xlu0 %556
    %v558 = vadd.f32 %v547, %v548
    %559 = vadd.xlane.f32.xlu0 %v558
    %v560 = vpop.xlane.xlu0 %559
    %v561 = vmax.f32 %v551, 1e-30
    %v562 = vmax.f32 %v554, 1e-30
    %v563 = vmax.f32 %v557, 1e-30
    %v564 = vmax.f32 %v560, 1e-30
    %v565 = vrsqrt.pop %v561
    %v566 = vrsqrt.pop %v562
    %v567 = vrsqrt.pop %v563
    %v568 = vrsqrt.pop %v564
    %v569 = vmul.f32 %v533, %v565
    %v570 = vmul.f32 %v534, %v565
    %v571 = vmul.f32 %v535, %v566
    %v572 = vmul.f32 %v536, %v566
    %v573 = vmul.f32 %v537, %v567
    %v574 = vmul.f32 %v538, %v567
    %v575 = vmul.f32 %v539, %v568
    %v576 = vmul.f32 %v540, %v568
    %577 = vmatprep.subr.mxu0 %v478
    %578 = vmatpush1.xpose.msra.mxu0 %v477
    %579 = vmatprep.subr.mxu0 %v480
    %580 = vmatpush1.xpose.msra.mxu0 %v479
    %581 = vmatprep.subr.mxu0 %v482
    %582 = vmatpush1.xpose.msra.mxu0 %v481
    %583 = vmatprep.subr.mxu0 %v484
    %584 = vmatpush1.xpose.msra.mxu0 %v483
    %585 = vmatprep.subr.mxu0 %v486
    %586 = vmatpush1.xpose.msra.mxu0 %v485
    %587 = vmatprep.subr.mxu0 %v488
    %588 = vmatpush1.xpose.msra.mxu0 %v487
    %589 = vmatprep.subr.mxu0 %v490
    %590 = vmatpush1.xpose.msra.mxu0 %v489
    %591 = vmatprep.subr.mxu0 %v492
    %592 = vmatpush1.xpose.msra.mxu0 %v491
    %593 = vmatprep.subr.mxu0 %v494
    %594 = vmatpush1.xpose.msra.mxu0 %v493
    %595 = vmatprep.subr.mxu0 %v496
    %596 = vmatpush1.xpose.msra.mxu0 %v495
    %597 = vmatprep.subr.mxu0 %v498
    %598 = vmatpush1.xpose.msra.mxu0 %v497
    %599 = vmatprep.subr.mxu0 %v500
    %600 = vmatpush1.xpose.msra.mxu0 %v499
    %601 = vmatprep.subr.mxu0 %v502
    %602 = vmatpush1.xpose.msra.mxu0 %v501
    %603 = vmatprep.subr.mxu0 %v504
    %604 = vmatpush1.xpose.msra.mxu0 %v503
    %605 = vmatprep.subr.mxu0 %v506
    %606 = vmatpush1.xpose.msra.mxu0 %v505
    %607 = vmatprep.subr.mxu0 %v508
    %608 = vmatpush1.xpose.msra.mxu0 %v507
    %609 = vmatprep.subr.mxu0 0.0
    %610 = vmatpush1.xpose.msra.mxu0 0.0
    %611 = vmatprep.subr.mxu0 0.0
    %612 = vmatpush1.xpose.msra.mxu0 0.0
    %613 = vmatprep.subr.mxu0 0.0
    %614 = vmatpush1.xpose.msra.mxu0 0.0
    %615 = vmatprep.subr.mxu0 0.0
    %616 = vmatpush1.xpose.msra.mxu0 0.0
    %617 = vmatprep.subr.mxu0 0.0
    %618 = vmatpush1.xpose.msra.mxu0 0.0
    %619 = vmatprep.subr.mxu0 0.0
    %620 = vmatpush1.xpose.msra.mxu0 0.0
    %621 = vmatprep.subr.mxu0 0.0
    %622 = vmatpush1.xpose.msra.mxu0 0.0
    %623 = vmatprep.subr.mxu0 0.0
    %624 = vmatpush1.xpose.msra.mxu0 0.0
    %625 = vmatprep.subr.mxu0 0.0
    %626 = vmatpush1.xpose.msra.mxu0 0.0
    %627 = vmatprep.subr.mxu0 0.0
    %628 = vmatpush1.xpose.msra.mxu0 0.0
    %629 = vmatprep.subr.mxu0 0.0
    %630 = vmatpush1.xpose.msra.mxu0 0.0
    %631 = vmatprep.subr.mxu0 0.0
    %632 = vmatpush1.xpose.msra.mxu0 0.0
    %633 = vmatprep.subr.mxu0 0.0
    %634 = vmatpush1.xpose.msra.mxu0 0.0
    %635 = vmatprep.subr.mxu0 0.0
    %636 = vmatpush1.xpose.msra.mxu0 0.0
    %637 = vmatprep.subr.mxu0 0.0
    %638 = vmatpush1.xpose.msra.mxu0 0.0
    %639 = vmatprep.subr.mxu0 0.0
    %640 = vmatpush1.xpose.msra.mxu0 0.0
    %641 = vmatprep.mubr.f32.mxu0 %v570
    %642 = vmatmul.mubr.f32.gmra.mrb[0].mxu0 %v569
    %v643 = vpop.f32.mrb[0].mxu0
    %v644 = vadd.f32 0.0, %v643
    %v645 = vpop.f32.mrb[0].mxu0
    %646 = vmatprep.mubr.f32.mxu0 %v572
    %647 = vmatmul.mubr.f32.gmra.mrb[0].mxu0 %v571
    %v648 = vpop.f32.mrb[0].mxu0
    %v649 = vadd.f32 0.0, %v648
    %v650 = vpop.f32.mrb[0].mxu0
    %651 = vmatprep.mubr.f32.mxu0 %v574
    %652 = vmatmul.mubr.f32.gmra.mrb[0].mxu0 %v573
    %v653 = vpop.f32.mrb[0].mxu0
    %v654 = vadd.f32 0.0, %v653
    %v655 = vpop.f32.mrb[0].mxu0
    %656 = vmatprep.mubr.f32.mxu0 %v576
    %657 = vmatmul.mubr.f32.gmra.mrb[0].mxu0 %v575
    %v658 = vpop.f32.mrb[0].mxu0
    %v659 = vadd.f32 0.0, %v658
    %v660 = vpop.f32.mrb[0].mxu0
    %661 = vdwg.mxu0
    %vm662 = vcmp.gt.f32.partialorder %v644, 0.8
    %vm663 = vcmp.gt.f32.partialorder %v649, 0.8
    %vm664 = vcmp.gt.f32.partialorder %v654, 0.8
    %vm665 = vcmp.gt.f32.partialorder %v659, 0.8
    %v666 = vsel %vm662, 1, 0
    %v667 = vsel %vm663, 1, 0
    %v668 = vsel %vm664, 1, 0
    %v669 = vsel %vm665, 1, 0
    %v670 = vcvt.s32.f32 %v666
    %v671 = vcvt.s32.f32 %v667
    %v672 = vcvt.s32.f32 %v668
    %v673 = vcvt.s32.f32 %v669
    %v674 = vrot.slane %v670, 4
    %v675 = vadd.f32 %v670, %v674
    %v676 = vrot.slane %v675, 2
    %v677 = vadd.f32 %v675, %v676
    %v678 = vrot.slane %v677, 1
    %v679 = vadd.f32 %v677, %v678
    %v680 = vrot.slane %v671, 4
    %v681 = vadd.f32 %v671, %v680
    %v682 = vrot.slane %v681, 2
    %v683 = vadd.f32 %v681, %v682
    %v684 = vrot.slane %v683, 1
    %v685 = vadd.f32 %v683, %v684
    %v686 = vrot.slane %v672, 4
    %v687 = vadd.f32 %v672, %v686
    %v688 = vrot.slane %v687, 2
    %v689 = vadd.f32 %v687, %v688
    %v690 = vrot.slane %v689, 1
    %v691 = vadd.f32 %v689, %v690
    %v692 = vrot.slane %v673, 4
    %v693 = vadd.f32 %v673, %v692
    %v694 = vrot.slane %v693, 2
    %v695 = vadd.f32 %v693, %v694
    %v696 = vrot.slane %v695, 1
    %v697 = vadd.f32 %v695, %v696
    %vm698 = vcmp.gt.f32.partialorder %v679, 0.5
    %vm699 = vcmp.gt.f32.partialorder %v685, 0.5
    %vm700 = vcmp.gt.f32.partialorder %v691, 0.5
    %vm701 = vcmp.gt.f32.partialorder %v697, 0.5
    %v702 = vsel %vm698, 1, 0
    %v703 = vsel %vm699, 1, 0
    %v704 = vsel %vm700, 1, 0
    %v705 = vsel %vm701, 1, 0
    %v706 = vcvt.s32.f32 %v702
    %v707 = vcvt.s32.f32 %v703
    %v708 = vcvt.s32.f32 %v704
    %v709 = vcvt.s32.f32 %v705
    %v710 = vcvt.f32.s32.to.zero.pseudo %v706
    %v711 = vcvt.f32.s32.to.zero.pseudo %v707
    %v712 = vcvt.f32.s32.to.zero.pseudo %v708
    %v713 = vcvt.f32.s32.to.zero.pseudo %v709
    %vm714 = vcmask 1041409
    %v715 = vsel %vm714, %v711, %v710
    %vm716 = vcmask 1042434
    %v717 = vsel %vm716, %v712, %v715
    %vm718 = vcmask 1043459
    %v719 = vsel %vm718, %v713, %v717
    %720 = vst [vmem:[#allocation7] sm:$0xf] %v719
    %vm721 = vcmp.lt.s32.totalorder %v85, 10
    %v726 = vsel %vm714, %v707, %v706
    %v727 = vsel %vm716, %v708, %v726
    %v728 = vsel %vm718, %v709, %v727
    %v730 = vsel %vm721, %v728, 0.0
    %vm731 = vcmp.ge.s32.totalorder %v85, 10
    %vm732 = vcmp.lt.s32.totalorder %v85, 20
    %vm733 = vmand %vm731, %vm732
    %v734 = vsel %vm733, %v728, 0.0
    %735 = vmatprep.subr.mxu0 %v202
    %736 = vmatpush1.msra.mxu0 %v201
    %737 = vmatprep.subr.mxu0 %v204
    %738 = vmatpush1.msra.mxu0 %v203
    %739 = vmatprep.subr.mxu0 %v206
    %740 = vmatpush1.msra.mxu0 %v205
    %741 = vmatprep.subr.mxu0 %v208
    %742 = vmatpush1.msra.mxu0 %v207
    %743 = vmatprep.subr.mxu0 %v210
    %744 = vmatpush1.msra.mxu0 %v209
    %745 = vmatprep.subr.mxu0 %v212
    %746 = vmatpush1.msra.mxu0 %v211
    %747 = vmatprep.subr.mxu0 %v214
    %748 = vmatpush1.msra.mxu0 %v213
    %749 = vmatprep.subr.mxu0 %v216
    %750 = vmatpush1.msra.mxu0 %v215
    %751 = vmatprep.subr.mxu0 %v218
    %752 = vmatpush1.msra.mxu0 %v217
    %753 = vmatprep.subr.mxu0 %v220
    %754 = vmatpush1.msra.mxu0 %v219
    %755 = vmatprep.subr.mxu0 %v222
    %756 = vmatpush1.msra.mxu0 %v221
    %757 = vmatprep.subr.mxu0 %v224
    %758 = vmatpush1.msra.mxu0 %v223
    %759 = vmatprep.subr.mxu0 %v226
    %760 = vmatpush1.msra.mxu0 %v225
    %761 = vmatprep.subr.mxu0 %v228
    %762 = vmatpush1.msra.mxu0 %v227
    %763 = vmatprep.subr.mxu0 %v230
    %764 = vmatpush1.msra.mxu0 %v229
    %765 = vmatprep.subr.mxu0 %v232
    %766 = vmatpush1.msra.mxu0 %v231
    %767 = vmatprep.subr.mxu0 0.0
    %768 = vmatpush1.msra.mxu0 0.0
    %769 = vmatprep.subr.mxu0 0.0
    %770 = vmatpush1.msra.mxu0 0.0
    %771 = vmatprep.subr.mxu0 0.0
    %772 = vmatpush1.msra.mxu0 0.0
    %773 = vmatprep.subr.mxu0 0.0
    %774 = vmatpush1.msra.mxu0 0.0
    %775 = vmatprep.subr.mxu0 0.0
    %776 = vmatpush1.msra.mxu0 0.0
    %777 = vmatprep.subr.mxu0 0.0
    %778 = vmatpush1.msra.mxu0 0.0
    %779 = vmatprep.subr.mxu0 0.0
    %780 = vmatpush1.msra.mxu0 0.0
    %781 = vmatprep.subr.mxu0 0.0
    %782 = vmatpush1.msra.mxu0 0.0
    %783 = vmatprep.subr.mxu0 0.0
    %784 = vmatpush1.msra.mxu0 0.0
    %785 = vmatprep.subr.mxu0 0.0
    %786 = vmatpush1.msra.mxu0 0.0
    %787 = vmatprep.subr.mxu0 0.0
    %788 = vmatpush1.msra.mxu0 0.0
    %789 = vmatprep.subr.mxu0 0.0
    %790 = vmatpush1.msra.mxu0 0.0
    %791 = vmatprep.subr.mxu0 0.0
    %792 = vmatpush1.msra.mxu0 0.0
    %793 = vmatprep.subr.mxu0 0.0
    %794 = vmatpush1.msra.mxu0 0.0
    %795 = vmatprep.subr.mxu0 0.0
    %796 = vmatpush1.msra.mxu0 0.0
    %797 = vmatprep.subr.mxu0 0.0
    %798 = vmatpush1.msra.mxu0 0.0
    %799 = vmatprep.mubr.f32.mxu0 0.0
    %800 = vmatmul.mubr.f32.gmra.mrb[0].mxu0 %v730
    %v801 = vpop.f32.mrb[0].mxu0
    %v802 = vadd.f32 0.0, %v801
    %v803 = vpop.f32.mrb[0].mxu0
    %v804 = vadd.f32 0.0, %v803
    %805 = vdwg.mxu0
    %v808 = vcombine.low %v802, %v804
    %810 = vst [vmem:[#allocation8] sm:$0xff] %v808
    %811 = vmatprep.subr.mxu0 %v202
    %812 = vmatpush1.msra.mxu0 %v201
    %813 = vmatprep.subr.mxu0 %v204
    %814 = vmatpush1.msra.mxu0 %v203
    %815 = vmatprep.subr.mxu0 %v206
    %816 = vmatpush1.msra.mxu0 %v205
    %817 = vmatprep.subr.mxu0 %v208
    %818 = vmatpush1.msra.mxu0 %v207
    %819 = vmatprep.subr.mxu0 %v210
    %820 = vmatpush1.msra.mxu0 %v209
    %821 = vmatprep.subr.mxu0 %v212
    %822 = vmatpush1.msra.mxu0 %v211
    %823 = vmatprep.subr.mxu0 %v214
    %824 = vmatpush1.msra.mxu0 %v213
    %825 = vmatprep.subr.mxu0 %v216
    %826 = vmatpush1.msra.mxu0 %v215
    %827 = vmatprep.subr.mxu0 %v218
    %828 = vmatpush1.msra.mxu0 %v217
    %829 = vmatprep.subr.mxu0 %v220
    %830 = vmatpush1.msra.mxu0 %v219
    %831 = vmatprep.subr.mxu0 %v222
    %832 = vmatpush1.msra.mxu0 %v221
    %833 = vmatprep.subr.mxu0 %v224
    %834 = vmatpush1.msra.mxu0 %v223
    %835 = vmatprep.subr.mxu0 %v226
    %836 = vmatpush1.msra.mxu0 %v225
    %837 = vmatprep.subr.mxu0 %v228
    %838 = vmatpush1.msra.mxu0 %v227
    %839 = vmatprep.subr.mxu0 %v230
    %840 = vmatpush1.msra.mxu0 %v229
    %841 = vmatprep.subr.mxu0 %v232
    %842 = vmatpush1.msra.mxu0 %v231
    %843 = vmatprep.subr.mxu0 0.0
    %844 = vmatpush1.msra.mxu0 0.0
    %845 = vmatprep.subr.mxu0 0.0
    %846 = vmatpush1.msra.mxu0 0.0
    %847 = vmatprep.subr.mxu0 0.0
    %848 = vmatpush1.msra.mxu0 0.0
    %849 = vmatprep.subr.mxu0 0.0
    %850 = vmatpush1.msra.mxu0 0.0
    %851 = vmatprep.subr.mxu0 0.0
    %852 = vmatpush1.msra.mxu0 0.0
    %853 = vmatprep.subr.mxu0 0.0
    %854 = vmatpush1.msra.mxu0 0.0
    %855 = vmatprep.subr.mxu0 0.0
    %856 = vmatpush1.msra.mxu0 0.0
    %857 = vmatprep.subr.mxu0 0.0
    %858 = vmatpush1.msra.mxu0 0.0
    %859 = vmatprep.subr.mxu0 0.0
    %860 = vmatpush1.msra.mxu0 0.0
    %861 = vmatprep.subr.mxu0 0.0
    %862 = vmatpush1.msra.mxu0 0.0
    %863 = vmatprep.subr.mxu0 0.0
    %864 = vmatpush1.msra.mxu0 0.0
    %865 = vmatprep.subr.mxu0 0.0
    %866 = vmatpush1.msra.mxu0 0.0
    %867 = vmatprep.subr.mxu0 0.0
    %868 = vmatpush1.msra.mxu0 0.0
    %869 = vmatprep.subr.mxu0 0.0
    %870 = vmatpush1.msra.mxu0 0.0
    %871 = vmatprep.subr.mxu0 0.0
    %872 = vmatpush1.msra.mxu0 0.0
    %873 = vmatprep.subr.mxu0 0.0
    %874 = vmatpush1.msra.mxu0 0.0
    %875 = vmatprep.mubr.f32.mxu0 0.0
    %876 = vmatmul.mubr.f32.gmra.mrb[0].mxu0 %v734
    %v877 = vpop.f32.mrb[0].mxu0
    %v878 = vadd.f32 0.0, %v877
    %v879 = vpop.f32.mrb[0].mxu0
    %v880 = vadd.f32 0.0, %v879
    %881 = vdwg.mxu0
    %v884 = vcombine.low %v878, %v880
    %886 = vst [vmem:[#allocation10] sm:$0xff] %v884
    // Predicated region
    $region18: #{tpu_custom_call.1} parent=1 // pred_check
      _
    $region19: #{tpu_custom_call.1} parent=1 // pred_check_branch
      %888 = sbr.rel (0) target = $region21
    $region20: #{tpu_custom_call.1} parent=1 // pred_region
      %s890 = ssub.s32 64, 64
      %891 = vsyncadd [#allocation4], %s890
      %s893 = sshll.u32 [#allocation7], 4
      %s894 = int_to_ptr.vmem [resolvable:$true] %s893
      %896 = dma.vmem_to_hbm [thread:$0]  %s894, 64, %s2, [#allocation4]
    $region21: #{tpu_custom_call.1} parent=1 // pred_fallthru
      _
    // Predicated region
    $region22: #{tpu_custom_call.1} parent=1 // pred_check
      _
    $region23: #{tpu_custom_call.1} parent=1 // pred_check_branch
      %898 = sbr.rel (0) target = $region25
    $region24: #{tpu_custom_call.1} parent=1 // pred_region
      %s900 = ssub.s32 128, 128
      %901 = vsyncadd [#allocation9], %s900
      %s903 = sshll.u32 [#allocation8], 4
      %s904 = int_to_ptr.vmem [resolvable:$true] %s903
      %906 = dma.vmem_to_hbm [thread:$0]  %s904, 128, %s3, [#allocation9]
    $region25: #{tpu_custom_call.1} parent=1 // pred_fallthru
      _
    // Predicated region
    $region26: #{tpu_custom_call.1} parent=1 // pred_check
      _
    $region27: #{tpu_custom_call.1} parent=1 // pred_check_branch
      %908 = sbr.rel (0) target = $region29
    $region28: #{tpu_custom_call.1} parent=1 // pred_region
      %s910 = ssub.s32 128, 128
      %911 = vsyncadd [#allocation9], %s910
      %s913 = sshll.u32 [#allocation10], 4
      %s914 = int_to_ptr.vmem [resolvable:$true] %s913
      %916 = dma.vmem_to_hbm [thread:$0]  %s914, 128, %s4, [#allocation9]
    $region29: #{tpu_custom_call.1} parent=1 // pred_fallthru
      _
    // Predicated region
    $region30: #{tpu_custom_call.1} parent=1 // pred_check
      _
    $region31: #{tpu_custom_call.1} parent=1 // pred_check_branch
      %918 = sbr.rel (0) target = $region33
    $region32: #{tpu_custom_call.1} parent=1 // pred_region
      %919 = dma.done [#allocation4], 64
    $region33: #{tpu_custom_call.1} parent=1 // pred_fallthru
      _
    // Predicated region
    $region34: #{tpu_custom_call.1} parent=1 // pred_check
      _
    $region35: #{tpu_custom_call.1} parent=1 // pred_check_branch
      %921 = sbr.rel (0) target = $region37
    $region36: #{tpu_custom_call.1} parent=1 // pred_region
      %922 = dma.done [#allocation9], 128
    $region37: #{tpu_custom_call.1} parent=1 // pred_fallthru
      _
    // Predicated region
    $region38: #{tpu_custom_call.1} parent=1 // pred_check
      _
    $region39: #{tpu_custom_call.1} parent=1 // pred_check_branch
      %924 = sbr.rel (0) target = $region41
    $region40: #{tpu_custom_call.1} parent=1 // pred_region
      %925 = dma.done [#allocation9], 128
    $region41: #{tpu_custom_call.1} parent=1 // pred_fallthru
      _
    %926 = vsyncpa [#allocation3], 1
    %927 = vsyncpa [#allocation6], 1
    %928 = vsyncpa [#allocation4], 1
    %929 = vsyncpa [#allocation9], 1

</llo_original>
